<compile_context>
chip_gen: v7x
topology: tpu7x:2x2x1
jax: 0.10.0
libtpu: 0.0.40
codegen_flags: <defaults>
</compile_context>

<pallas_src>
import functools

import jax
import jax.numpy as jnp
from jax import lax
from jax.experimental import pallas as pl
from jax.experimental.pallas import tpu as pltpu


def _round_up(x, m):
    return ((x + m - 1) // m) * m


def projection_head_kernel(x_ref, w1_ref, w2_ref, vec_ref, o_ref, *, p_true):
    # vec_ref rows: 0 = b1, 1 = b2, 2 = gamma, 3 = beta  (packed resident constants)
    b1 = vec_ref[0:1, :].astype(jnp.float32)
    b2 = vec_ref[1:2, :].astype(jnp.float32)
    gamma = vec_ref[2:3, :].astype(jnp.float32)
    beta = vec_ref[3:4, :].astype(jnp.float32)

    # First GEMM (MXU): keep the operands' native dtype (bf16-native path when x/w1
    # are bf16); accumulate in f32 via preferred_element_type.
    projected = jnp.dot(x_ref[...], w1_ref[...], preferred_element_type=jnp.float32)
    projected = projected + b1

    # Exact GELU (torch.nn.GELU default): 0.5 * x * (1 + erf(x / sqrt(2))).
    # (tanh-approx GELU would move work VALU->EUP but deviates numerically; keep exact.)
    h = 0.5 * projected * (1.0 + lax.erf(projected * jnp.float32(0.7071067811865476)))

    # Second GEMM: cast back to the weight dtype so bf16 params keep the MXU-native
    # operand path; accumulate in f32.
    h = jnp.dot(h.astype(w2_ref.dtype), w2_ref[...], preferred_element_type=jnp.float32)
    h = h + b2

    # Dropout: inference mode -> identity.
    # TODO(synk): training-mode dropout (pltpu.prng_random_bits mask) not implemented; eval semantics only.

    # Residual
    h = h + projected

    # LayerNorm over the *true* projection dim. Padded lanes of h are exactly 0 by
    # construction (zero-padded weight columns / biases), so sum/p_true is the correct
    # mean; only the variance needs a lane mask (centered is nonzero in padded lanes).
    p_pad = h.shape[-1]
    inv_p = jnp.float32(1.0 / p_true)
    mean = jnp.sum(h, axis=-1, keepdims=True) * inv_p
    centered = h - mean
    if p_true == p_pad:
        var = jnp.sum(centered * centered, axis=-1, keepdims=True) * inv_p
    else:
        lane = lax.broadcasted_iota(jnp.int32, (1, p_pad), 1)      # (1, P_pad) mask only
        cmask = jnp.where(lane < p_true, centered, 0.0)
        var = jnp.sum(cmask * cmask, axis=-1, keepdims=True) * inv_p

    normed = centered * lax.rsqrt(var + jnp.float32(1e-5))
    o_ref[...] = (normed * gamma + beta).astype(o_ref.dtype)


@jax.jit
def projection_head(x, w1, b1, w2, b2, gamma, beta):
    B, E = x.shape
    P = w1.shape[1]
    out_dtype = x.dtype
    x_item = jnp.dtype(x.dtype).itemsize
    w_item = jnp.dtype(w1.dtype).itemsize
    o_item = jnp.dtype(out_dtype).itemsize

    # Generation-aware knobs (v5e/v6e: 128 MiB VMEM, v7x: 64 MiB).
    try:
        vmem_cap = int(pltpu.get_tpu_info().vmem_capacity_bytes)
    except Exception:
        vmem_cap = 64 << 20
    big_vmem = vmem_cap >= (100 << 20)
    vmem_ceiling = (vmem_cap * 3) // 4            # ~96 MiB on v5e/v6e, ~48 MiB on v7x
    TB_MAX = 512 if big_vmem else 256             # bigger row tiles on the 128-MiB chips

    # Lane-dense feature padding.
    E_pad = _round_up(E, 128)
    P_pad = _round_up(P, 128)

    # Balanced batch tiles: choose tile count first, then an 8-aligned tile size,
    # so awkward batch sizes don't pad up to 2x.  Force >= 2 tiles when B is large
    # enough so the "parallel" batch axis feeds both v7x TensorCores.
    nb = max(1, pl.cdiv(B, TB_MAX))
    if nb == 1 and B >= 256:
        nb = 2
    tb = _round_up(max(1, pl.cdiv(B, nb)), 8)
    B_pad = tb * nb

    def pad2(a, rows, cols):
        r, c = a.shape
        if r == rows and c == cols:               # skip HBM round-trip when already aligned
            return a
        return jnp.pad(a, ((0, rows - r), (0, cols - c)))

    xp = pad2(x, B_pad, E_pad)
    w1p = pad2(w1, E_pad, P_pad)
    w2p = pad2(w2, P_pad, P_pad)
    vecs = jnp.concatenate(                       # one resident (4, P_pad) operand
        [pad2(b1, 1, P_pad), pad2(b2, 1, P_pad),
         pad2(gamma, 1, P_pad), pad2(beta, 1, P_pad)], axis=0)

    # VMEM budget: single-buffered resident weights/vectors + double-buffered
    # activation tiles + the f32 intermediates (projected / h / centered / normed).
    weights_bytes = (E_pad * P_pad + P_pad * P_pad + 8 * P_pad) * w_item
    act_bytes = 2 * tb * (E_pad * x_item + P_pad * o_item)
    interm_bytes = 4 * tb * P_pad * 4
    vmem_bytes = weights_bytes + act_bytes + interm_bytes + (4 << 20)
    vmem_bytes = int(min(max(vmem_bytes, 32 << 20), vmem_ceiling))

    cost = pl.CostEstimate(
        flops=2 * B_pad * E_pad * P_pad + 2 * B_pad * P_pad * P_pad,
        transcendentals=B_pad * P_pad,
        bytes_accessed=(B_pad * E_pad * x_item
                        + (E_pad * P_pad + P_pad * P_pad + 4 * P_pad) * w_item
                        + B_pad * P_pad * o_item),
    )

    kernel = functools.partial(projection_head_kernel, p_true=P)
    # Constant block index -> single buffer (no wasted double-buffer VMEM).
    resident = dict(pipeline_mode=pl.Buffered(1)) if hasattr(pl, "Buffered") else {}

    out = pl.pallas_call(
        kernel,
        out_shape=jax.ShapeDtypeStruct((B_pad, P_pad), out_dtype),
        grid=(nb,),
        in_specs=[
            pl.BlockSpec((tb, E_pad), lambda i: (i, 0)),                 # x: streamed over batch
            pl.BlockSpec((E_pad, P_pad), lambda i: (0, 0), **resident),  # w1: VMEM-resident
            pl.BlockSpec((P_pad, P_pad), lambda i: (0, 0), **resident),  # w2: VMEM-resident
            pl.BlockSpec((4, P_pad), lambda i: (0, 0), **resident),      # b1/b2/gamma/beta
        ],
        out_specs=pl.BlockSpec((tb, P_pad), lambda i: (i, 0)),
        compiler_params=pltpu.CompilerParams(
            dimension_semantics=("parallel",),    # shards batch tiles across TCs on v7x
            vmem_limit_bytes=vmem_bytes,
        ),
        cost_estimate=cost,
    )(xp, w1p, w2p, vecs)

    if B_pad == B and P_pad == P:
        return out
    return out[:B, :P]


def init_params(key, embedding_dim, projection_dim, dtype=jnp.float32):
    """Deterministic init mimicking nn.Linear / nn.LayerNorm shapes."""
    k1, k2, k3, k4 = jax.random.split(key, 4)
    lim1 = 1.0 / jnp.sqrt(embedding_dim)
    lim2 = 1.0 / jnp.sqrt(projection_dim)
    # stored transposed relative to PyTorch ([in, out]) for row-major matmul
    w1 = jax.random.uniform(k1, (embedding_dim, projection_dim), dtype, -lim1, lim1)
    b1 = jax.random.uniform(k2, (1, projection_dim), dtype, -lim1, lim1)
    w2 = jax.random.uniform(k3, (projection_dim, projection_dim), dtype, -lim2, lim2)
    b2 = jax.random.uniform(k4, (1, projection_dim), dtype, -lim2, lim2)
    gamma = jnp.ones((1, projection_dim), dtype)
    beta = jnp.zeros((1, projection_dim), dtype)
    return w1, b1, w2, b2, gamma, beta


def reference(x, w1, b1, w2, b2, gamma, beta):
    projected = x @ w1 + b1
    h = jax.nn.gelu(projected, approximate=False)
    h = h @ w2 + b2
    h = h + projected
    mean = jnp.mean(h, axis=-1, keepdims=True)
    var = jnp.mean((h - mean) ** 2, axis=-1, keepdims=True)
    return (h - mean) / jnp.sqrt(var + 1e-5) * gamma + beta


if __name__ == "__main__":
    key = jax.random.PRNGKey(0)
    k_x, k_p = jax.random.split(key)

    B, E, P = 2, 32, 64          # batch=2, embedding_dim=32, projection_dim=64
    x = jax.random.normal(k_x, (B, E), jnp.float32)
    params = init_params(k_p, E, P)

    out = jax.block_until_ready(projection_head(x, *params))
    ref = reference(x, *params)

    assert out.shape == (B, P)
    # Tolerance accounts for MXU vs default-XLA matmul precision paths for f32 operands.
    assert jnp.allclose(out, ref, atol=1e-2, rtol=1e-2), "mismatch vs JAX reference"

    print("KERNEL_OK")
</pallas_src>

<mosaic_0001>
module attributes {stable_mosaic.version = 11 : i64} {
  func.func @projection_head_kernel(%arg0: i32, %arg1: memref<8x128xf32, #tpu.memory_space<vmem>>, %arg2: memref<128x128xf32, #tpu.memory_space<vmem>>, %arg3: memref<128x128xf32, #tpu.memory_space<vmem>>, %arg4: memref<4x128xf32, #tpu.memory_space<vmem>>, %arg5: memref<8x128xf32, #tpu.memory_space<vmem>>) attributes {dimension_semantics = [#tpu.dimension_semantics<parallel>], iteration_bounds = array<i64: 1>, scalar_prefetch = 0 : i64, scratch_operands = 0 : i64, tpu.core_type = #tpu.core_type<tc>, window_params = [{transform_indices = @transform_0, window_bounds = array<i64: 8, 128>}, {pipeline_mode = #tpu.pipeline_mode<synchronous>, transform_indices = @transform_1, window_bounds = array<i64: 128, 128>}, {pipeline_mode = #tpu.pipeline_mode<synchronous>, transform_indices = @transform_2, window_bounds = array<i64: 128, 128>}, {pipeline_mode = #tpu.pipeline_mode<synchronous>, transform_indices = @transform_3, window_bounds = array<i64: 4, 128>}, {transform_indices = @transform_4, window_bounds = array<i64: 8, 128>}]} {
    %c0 = arith.constant 0 : index
    %c0_0 = arith.constant 0 : index
    %0 = vector.load %arg4[%c0, %c0_0] : memref<4x128xf32, #tpu.memory_space<vmem>>, vector<1x128xf32>
    %c1 = arith.constant 1 : index
    %c0_1 = arith.constant 0 : index
    %1 = vector.load %arg4[%c1, %c0_1] : memref<4x128xf32, #tpu.memory_space<vmem>>, vector<1x128xf32>
    %c2 = arith.constant 2 : index
    %c0_2 = arith.constant 0 : index
    %2 = vector.load %arg4[%c2, %c0_2] : memref<4x128xf32, #tpu.memory_space<vmem>>, vector<1x128xf32>
    %c3 = arith.constant 3 : index
    %c0_3 = arith.constant 0 : index
    %3 = vector.load %arg4[%c3, %c0_3] : memref<4x128xf32, #tpu.memory_space<vmem>>, vector<1x128xf32>
    %c0_4 = arith.constant 0 : index
    %c0_5 = arith.constant 0 : index
    %4 = vector.load %arg1[%c0_4, %c0_5] : memref<8x128xf32, #tpu.memory_space<vmem>>, vector<8x128xf32>
    %c0_6 = arith.constant 0 : index
    %c0_7 = arith.constant 0 : index
    %5 = vector.load %arg2[%c0_6, %c0_7] : memref<128x128xf32, #tpu.memory_space<vmem>>, vector<128x128xf32>
    %cst = arith.constant dense<0.000000e+00> : vector<8x128xf32>
    %6 = tpu.matmul %4, %5, %cst {dimension_numbers = #tpu.dot_dimension_numbers<[1], [0], [0], [1], [0, 0, 1, 1], [], []>} : vector<8x128xf32>, vector<128x128xf32>, vector<8x128xf32> -> vector<8x128xf32>
    %7 = vector.broadcast %0 : vector<1x128xf32> to vector<8x128xf32>
    %8 = arith.addf %6, %7 : vector<8x128xf32>
    %cst_8 = arith.constant 5.000000e-01 : f32
    %9 = vector.broadcast %cst_8 : f32 to vector<8x128xf32>
    %10 = arith.mulf %9, %8 : vector<8x128xf32>
    %cst_9 = arith.constant 0.707106769 : f32
    %11 = vector.broadcast %cst_9 : f32 to vector<8x128xf32>
    %12 = arith.mulf %8, %11 : vector<8x128xf32>
    %13 = math.erf %12 : vector<8x128xf32>
    %cst_10 = arith.constant 1.000000e+00 : f32
    %14 = vector.broadcast %cst_10 : f32 to vector<8x128xf32>
    %15 = arith.addf %14, %13 : vector<8x128xf32>
    %16 = arith.mulf %10, %15 : vector<8x128xf32>
    %c0_11 = arith.constant 0 : index
    %c0_12 = arith.constant 0 : index
    %17 = vector.load %arg3[%c0_11, %c0_12] : memref<128x128xf32, #tpu.memory_space<vmem>>, vector<128x128xf32>
    %cst_13 = arith.constant dense<0.000000e+00> : vector<8x128xf32>
    %18 = tpu.matmul %16, %17, %cst_13 {dimension_numbers = #tpu.dot_dimension_numbers<[1], [0], [0], [1], [0, 0, 1, 1], [], []>} : vector<8x128xf32>, vector<128x128xf32>, vector<8x128xf32> -> vector<8x128xf32>
    %19 = vector.broadcast %1 : vector<1x128xf32> to vector<8x128xf32>
    %20 = arith.addf %18, %19 : vector<8x128xf32>
    %21 = arith.addf %20, %8 : vector<8x128xf32>
    %cst_14 = arith.constant dense<0.000000e+00> : vector<8xf32>
    %22 = vector.multi_reduction <add>, %21, %cst_14 [1] : vector<8x128xf32> to vector<8xf32>
    %23 = vector.shape_cast %22 : vector<8xf32> to vector<8x1xf32>
    %cst_15 = arith.constant 1.562500e-02 : f32
    %24 = vector.broadcast %cst_15 : f32 to vector<8x1xf32>
    %25 = arith.mulf %23, %24 : vector<8x1xf32>
    %26 = vector.broadcast %25 : vector<8x1xf32> to vector<8x128xf32>
    %27 = arith.subf %21, %26 : vector<8x128xf32>
    %28 = tpu.iota {dimensions = array<i32: 1>} : vector<1x128xi32>
    %c64_i32 = arith.constant 64 : i32
    %29 = vector.broadcast %c64_i32 : i32 to vector<1x128xi32>
    %30 = arith.cmpi slt, %28, %29 : vector<1x128xi32>
    %cst_16 = arith.constant 0.000000e+00 : f32
    %31 = vector.shape_cast %30 : vector<1x128xi1> to vector<1x128xi1>
    %32 = vector.broadcast %31 : vector<1x128xi1> to vector<8x128xi1>
    %33 = vector.broadcast %cst_16 : f32 to vector<8x128xf32>
    %34 = arith.select %32, %27, %33 : vector<8x128xi1>, vector<8x128xf32>
    %35 = arith.mulf %34, %34 : vector<8x128xf32>
    %cst_17 = arith.constant dense<0.000000e+00> : vector<8xf32>
    %36 = vector.multi_reduction <add>, %35, %cst_17 [1] : vector<8x128xf32> to vector<8xf32>
    %37 = vector.shape_cast %36 : vector<8xf32> to vector<8x1xf32>
    %cst_18 = arith.constant 1.562500e-02 : f32
    %38 = vector.broadcast %cst_18 : f32 to vector<8x1xf32>
    %39 = arith.mulf %37, %38 : vector<8x1xf32>
    %cst_19 = arith.constant 9.99999974E-6 : f32
    %40 = vector.broadcast %cst_19 : f32 to vector<8x1xf32>
    %41 = arith.addf %39, %40 : vector<8x1xf32>
    %42 = math.rsqrt %41 : vector<8x1xf32>
    %43 = vector.broadcast %42 : vector<8x1xf32> to vector<8x128xf32>
    %44 = arith.mulf %27, %43 : vector<8x128xf32>
    %45 = vector.broadcast %2 : vector<1x128xf32> to vector<8x128xf32>
    %46 = arith.mulf %44, %45 : vector<8x128xf32>
    %47 = vector.broadcast %3 : vector<1x128xf32> to vector<8x128xf32>
    %48 = arith.addf %46, %47 : vector<8x128xf32>
    %c0_20 = arith.constant 0 : index
    %c0_21 = arith.constant 0 : index
    %49 = vector.load %arg5[%c0_20, %c0_21] : memref<8x128xf32, #tpu.memory_space<vmem>>, vector<8x128xf32>
    tpu.vector_store %arg5[%c0_20, %c0_21], %48 {strides = array<i32>} : memref<8x128xf32, #tpu.memory_space<vmem>>, vector<8x128xf32>,
    return
  }
  func.func @transform_0(%arg0: i32) -> (i32, i32) {
    %c0_i32 = arith.constant 0 : i32
    %c0_i32_0 = arith.constant 0 : i32
    return %arg0, %c0_i32 : i32, i32
  }
  func.func @transform_1(%arg0: i32) -> (i32, i32) {
    %c0_i32 = arith.constant 0 : i32
    %c0_i32_0 = arith.constant 0 : i32
    %c0_i32_1 = arith.constant 0 : i32
    return %c0_i32, %c0_i32_0 : i32, i32
  }
  func.func @transform_2(%arg0: i32) -> (i32, i32) {
    %c0_i32 = arith.constant 0 : i32
    %c0_i32_0 = arith.constant 0 : i32
    %c0_i32_1 = arith.constant 0 : i32
    return %c0_i32, %c0_i32_0 : i32, i32
  }
  func.func @transform_3(%arg0: i32) -> (i32, i32) {
    %c0_i32 = arith.constant 0 : i32
    %c0_i32_0 = arith.constant 0 : i32
    %c0_i32_1 = arith.constant 0 : i32
    return %c0_i32, %c0_i32_0 : i32, i32
  }
  func.func @transform_4(%arg0: i32) -> (i32, i32) {
    %c0_i32 = arith.constant 0 : i32
    %c0_i32_0 = arith.constant 0 : i32
    return %arg0, %c0_i32 : i32, i32
  }
}

</mosaic_0001>

<llo_original>
// kernel: projection_head.1
$region0: #{projection_head.1}
  #allocation0 [shape = 'u32[]', space=smem, size = 0x4, offset = 0x4, fixed_abs, tag = 'smem constant byte address 0x4 - core index']
  #allocation1 [shape = 'u32[144,128]{1,0:T(1,128)}', space=vmem, size = 0x12000, scoped, tag = 'internal scratch']
  %s0 = inlined_call_operand.vmem [shape: f32[8,128], index: 0, kind: input, shape index: {}]
  %s1 = inlined_call_operand.vmem [shape: f32[128,128], index: 1, kind: input, shape index: {}]
  %s2 = inlined_call_operand.vmem [shape: f32[128,128], index: 2, kind: input, shape index: {}]
  %s3 = inlined_call_operand.vmem [shape: f32[4,128], index: 3, kind: input, shape index: {}]
  %s4 = inlined_call_operand.vmem [shape: f32[8,128], index: 4, kind: output, shape index: {}]
  %s5 = sld [smem:[#allocation0]]
  $region26: #{projection_head.1} parent=0
    _
  %s7 = ssub.s32 1, %s5
  %s8 = scalar_select 0, %s7, %s5
  // Predicated region
  $region2: #{projection_head.1} parent=0 // pred_check
    _
  $region3: #{projection_head.1} parent=0 // pred_check_branch
    %10 = sbr.rel (0) target = $region5
  $region4: #{projection_head.1} parent=0 // pred_region
    _
  $region5: #{projection_head.1} parent=0 // pred_fallthru
    _
  // Predicated region
  $region6: #{projection_head.1} parent=0 // pred_check
    _
  $region7: #{projection_head.1} parent=0 // pred_check_branch
    %12 = sbr.rel (0) target = $region9
  $region8: #{projection_head.1} parent=0 // pred_region
    _
  $region9: #{projection_head.1} parent=0 // pred_fallthru
    _
  // Predicated region
  $region10: #{projection_head.1} parent=0 // pred_check
    _
  $region11: #{projection_head.1} parent=0 // pred_check_branch
    %14 = sbr.rel (0) target = $region13
  $region12: #{projection_head.1} parent=0 // pred_region
    _
  $region13: #{projection_head.1} parent=0 // pred_fallthru
    _
  // Predicated region
  $region14: #{projection_head.1} parent=0 // pred_check
    _
  $region15: #{projection_head.1} parent=0 // pred_check_branch
    %16 = sbr.rel (0) target = $region17
  $region16: #{projection_head.1} parent=0 // pred_region
    _
  $region17: #{projection_head.1} parent=0 // pred_fallthru
    _
  %v17 = vld [vmem:[%s3] sm:$0x1]
  %v18 = vld [vmem:[%s3 + $0x1] sm:$0x1]
  %v19 = vld [vmem:[%s3 + $0x2] sm:$0x1]
  %v20 = vld [vmem:[%s3 + $0x3] sm:$0x1]
  %v21 = vld [vmem:[%s0] sm:$0xff]
  %v22 = vld [vmem:[%s1] sm:$0xff]
  %v23 = vld [vmem:[%s1 + $0x8] sm:$0xff]
  %v24 = vld [vmem:[%s1 + $0x10] sm:$0xff]
  %v25 = vld [vmem:[%s1 + $0x18] sm:$0xff]
  %v26 = vld [vmem:[%s1 + $0x20] sm:$0xff]
  %v27 = vld [vmem:[%s1 + $0x28] sm:$0xff]
  %v28 = vld [vmem:[%s1 + $0x30] sm:$0xff]
  %v29 = vld [vmem:[%s1 + $0x38] sm:$0xff]
  %v30 = vld [vmem:[%s1 + $0x40] sm:$0xff]
  %v31 = vld [vmem:[%s1 + $0x48] sm:$0xff]
  %v32 = vld [vmem:[%s1 + $0x50] sm:$0xff]
  %v33 = vld [vmem:[%s1 + $0x58] sm:$0xff]
  %v34 = vld [vmem:[%s1 + $0x60] sm:$0xff]
  %v35 = vld [vmem:[%s1 + $0x68] sm:$0xff]
  %v36 = vld [vmem:[%s1 + $0x70] sm:$0xff]
  %v37 = vld [vmem:[%s1 + $0x78] sm:$0xff]
  %v38 = vlaneseq
  %v39 = vshrl.u32 %v38, 7
  %v40 = vsub.s32 0, %v39
  %v41 = vrot.slane %v17, %v40
  %42 = vmatprep.subr.mxu0 0.0
  %43 = vmatpush1.msra.mxu0 %v22
  %44 = vmatprep.subr.mxu0 0.0
  %45 = vmatpush1.msra.mxu0 %v23
  %46 = vmatprep.subr.mxu0 0.0
  %47 = vmatpush1.msra.mxu0 %v24
  %48 = vmatprep.subr.mxu0 0.0
  %49 = vmatpush1.msra.mxu0 %v25
  %50 = vmatprep.subr.mxu0 0.0
  %51 = vmatpush1.msra.mxu0 %v26
  %52 = vmatprep.subr.mxu0 0.0
  %53 = vmatpush1.msra.mxu0 %v27
  %54 = vmatprep.subr.mxu0 0.0
  %55 = vmatpush1.msra.mxu0 %v28
  %56 = vmatprep.subr.mxu0 0.0
  %57 = vmatpush1.msra.mxu0 %v29
  %58 = vmatprep.subr.mxu0 0.0
  %59 = vmatpush1.msra.mxu0 %v30
  %60 = vmatprep.subr.mxu0 0.0
  %61 = vmatpush1.msra.mxu0 %v31
  %62 = vmatprep.subr.mxu0 0.0
  %63 = vmatpush1.msra.mxu0 %v32
  %64 = vmatprep.subr.mxu0 0.0
  %65 = vmatpush1.msra.mxu0 %v33
  %66 = vmatprep.subr.mxu0 0.0
  %67 = vmatpush1.msra.mxu0 %v34
  %68 = vmatprep.subr.mxu0 0.0
  %69 = vmatpush1.msra.mxu0 %v35
  %70 = vmatprep.subr.mxu0 0.0
  %71 = vmatpush1.msra.mxu0 %v36
  %72 = vmatprep.subr.mxu0 0.0
  %73 = vmatpush1.msra.mxu0 %v37
  %74 = vmatprep.subr.mxu0 0.0
  %75 = vmatpush1.msra.mxu0 0.0
  %76 = vmatprep.subr.mxu0 0.0
  %77 = vmatpush1.msra.mxu0 0.0
  %78 = vmatprep.subr.mxu0 0.0
  %79 = vmatpush1.msra.mxu0 0.0
  %80 = vmatprep.subr.mxu0 0.0
  %81 = vmatpush1.msra.mxu0 0.0
  %82 = vmatprep.subr.mxu0 0.0
  %83 = vmatpush1.msra.mxu0 0.0
  %84 = vmatprep.subr.mxu0 0.0
  %85 = vmatpush1.msra.mxu0 0.0
  %86 = vmatprep.subr.mxu0 0.0
  %87 = vmatpush1.msra.mxu0 0.0
  %88 = vmatprep.subr.mxu0 0.0
  %89 = vmatpush1.msra.mxu0 0.0
  %90 = vmatprep.subr.mxu0 0.0
  %91 = vmatpush1.msra.mxu0 0.0
  %92 = vmatprep.subr.mxu0 0.0
  %93 = vmatpush1.msra.mxu0 0.0
  %94 = vmatprep.subr.mxu0 0.0
  %95 = vmatpush1.msra.mxu0 0.0
  %96 = vmatprep.subr.mxu0 0.0
  %97 = vmatpush1.msra.mxu0 0.0
  %98 = vmatprep.subr.mxu0 0.0
  %99 = vmatpush1.msra.mxu0 0.0
  %100 = vmatprep.subr.mxu0 0.0
  %101 = vmatpush1.msra.mxu0 0.0
  %102 = vmatprep.subr.mxu0 0.0
  %103 = vmatpush1.msra.mxu0 0.0
  %104 = vmatprep.subr.mxu0 0.0
  %105 = vmatpush1.msra.mxu0 0.0
  %106 = vmatprep.mubr.f32.mxu0 0.0
  %107 = vmatmul.mubr.f32.gmra.mrb[0].mxu0 %v21
  %v108 = vpop.f32.mrb[0].mxu0
  %v109 = vadd.f32 %v41, %v108
  %v110 = vpop.f32.mrb[0].mxu0
  %111 = vdwg.mxu0
  %v112 = vmul.f32 %v109, 0.5
  %v113 = vmul.f32 %v109, 0.70710677
  %v114 = verf.f32.pop %v113
  %v115 = vadd.f32 %v114, 1.0
  %v116 = vmul.f32 %v112, %v115
  %v117 = vld [vmem:[%s2] sm:$0xff]
  %v118 = vld [vmem:[%s2 + $0x8] sm:$0xff]
  %v119 = vld [vmem:[%s2 + $0x10] sm:$0xff]
  %v120 = vld [vmem:[%s2 + $0x18] sm:$0xff]
  %v121 = vld [vmem:[%s2 + $0x20] sm:$0xff]
  %v122 = vld [vmem:[%s2 + $0x28] sm:$0xff]
  %v123 = vld [vmem:[%s2 + $0x30] sm:$0xff]
  %v124 = vld [vmem:[%s2 + $0x38] sm:$0xff]
  %v125 = vld [vmem:[%s2 + $0x40] sm:$0xff]
  %v126 = vld [vmem:[%s2 + $0x48] sm:$0xff]
  %v127 = vld [vmem:[%s2 + $0x50] sm:$0xff]
  %v128 = vld [vmem:[%s2 + $0x58] sm:$0xff]
  %v129 = vld [vmem:[%s2 + $0x60] sm:$0xff]
  %v130 = vld [vmem:[%s2 + $0x68] sm:$0xff]
  %v131 = vld [vmem:[%s2 + $0x70] sm:$0xff]
  %v132 = vld [vmem:[%s2 + $0x78] sm:$0xff]
  %v133 = vlaneseq
  %v134 = vshrl.u32 %v133, 7
  %v135 = vsub.s32 0, %v134
  %v136 = vrot.slane %v18, %v135
  %137 = vmatprep.subr.mxu0 0.0
  %138 = vmatpush1.msra.mxu0 %v117
  %139 = vmatprep.subr.mxu0 0.0
  %140 = vmatpush1.msra.mxu0 %v118
  %141 = vmatprep.subr.mxu0 0.0
  %142 = vmatpush1.msra.mxu0 %v119
  %143 = vmatprep.subr.mxu0 0.0
  %144 = vmatpush1.msra.mxu0 %v120
  %145 = vmatprep.subr.mxu0 0.0
  %146 = vmatpush1.msra.mxu0 %v121
  %147 = vmatprep.subr.mxu0 0.0
  %148 = vmatpush1.msra.mxu0 %v122
  %149 = vmatprep.subr.mxu0 0.0
  %150 = vmatpush1.msra.mxu0 %v123
  %151 = vmatprep.subr.mxu0 0.0
  %152 = vmatpush1.msra.mxu0 %v124
  %153 = vmatprep.subr.mxu0 0.0
  %154 = vmatpush1.msra.mxu0 %v125
  %155 = vmatprep.subr.mxu0 0.0
  %156 = vmatpush1.msra.mxu0 %v126
  %157 = vmatprep.subr.mxu0 0.0
  %158 = vmatpush1.msra.mxu0 %v127
  %159 = vmatprep.subr.mxu0 0.0
  %160 = vmatpush1.msra.mxu0 %v128
  %161 = vmatprep.subr.mxu0 0.0
  %162 = vmatpush1.msra.mxu0 %v129
  %163 = vmatprep.subr.mxu0 0.0
  %164 = vmatpush1.msra.mxu0 %v130
  %165 = vmatprep.subr.mxu0 0.0
  %166 = vmatpush1.msra.mxu0 %v131
  %167 = vmatprep.subr.mxu0 0.0
  %168 = vmatpush1.msra.mxu0 %v132
  %169 = vmatprep.subr.mxu0 0.0
  %170 = vmatpush1.msra.mxu0 0.0
  %171 = vmatprep.subr.mxu0 0.0
  %172 = vmatpush1.msra.mxu0 0.0
  %173 = vmatprep.subr.mxu0 0.0
  %174 = vmatpush1.msra.mxu0 0.0
  %175 = vmatprep.subr.mxu0 0.0
  %176 = vmatpush1.msra.mxu0 0.0
  %177 = vmatprep.subr.mxu0 0.0
  %178 = vmatpush1.msra.mxu0 0.0
  %179 = vmatprep.subr.mxu0 0.0
  %180 = vmatpush1.msra.mxu0 0.0
  %181 = vmatprep.subr.mxu0 0.0
  %182 = vmatpush1.msra.mxu0 0.0
  %183 = vmatprep.subr.mxu0 0.0
  %184 = vmatpush1.msra.mxu0 0.0
  %185 = vmatprep.subr.mxu0 0.0
  %186 = vmatpush1.msra.mxu0 0.0
  %187 = vmatprep.subr.mxu0 0.0
  %188 = vmatpush1.msra.mxu0 0.0
  %189 = vmatprep.subr.mxu0 0.0
  %190 = vmatpush1.msra.mxu0 0.0
  %191 = vmatprep.subr.mxu0 0.0
  %192 = vmatpush1.msra.mxu0 0.0
  %193 = vmatprep.subr.mxu0 0.0
  %194 = vmatpush1.msra.mxu0 0.0
  %195 = vmatprep.subr.mxu0 0.0
  %196 = vmatpush1.msra.mxu0 0.0
  %197 = vmatprep.subr.mxu0 0.0
  %198 = vmatpush1.msra.mxu0 0.0
  %199 = vmatprep.subr.mxu0 0.0
  %200 = vmatpush1.msra.mxu0 0.0
  %201 = vmatprep.mubr.f32.mxu0 0.0
  %202 = vmatmul.mubr.f32.gmra.mrb[0].mxu0 %v116
  %v203 = vpop.f32.mrb[0].mxu0
  %v204 = vadd.f32 %v136, %v203
  %v205 = vpop.f32.mrb[0].mxu0
  %206 = vdwg.mxu0
  %v207 = vadd.f32 %v204, %v109
  %208 = vadd.xlane.f32.xlu0 %v207
  %v209 = vpop.xlane.xlu0 %208
  %v210 = vmul.f32 %v209, 0.015625
  %v211 = vsub.f32 %v207, %v210
  %v212 = vlaneseq
  %v213 = vand.u32 %v212, 127
  %vm214 = vcmp.lt.s32.totalorder %v213, 64
  %v215 = vsel %vm214, 1, 0
  %vm216 = vcmp.eq.s32.totalorder %v215, 1
  %v217 = vsel %vm216, %v211, 0.0
  %v218 = vmul.f32 %v217, %v217
  %219 = vadd.xlane.f32.xlu0 %v218
  %v220 = vpop.xlane.xlu0 %219
  %v221 = vmul.f32 %v220, 0.015625
  %v222 = vadd.f32 %v221, 1e-05
  %v223 = vrsqrt.pop %v222
  %v224 = vmul.f32 %v211, %v223
  %v225 = vlaneseq
  %v226 = vshrl.u32 %v225, 7
  %v227 = vsub.s32 0, %v226
  %v228 = vrot.slane %v19, %v227
  %v229 = vmul.f32 %v224, %v228
  %v230 = vlaneseq
  %v231 = vshrl.u32 %v230, 7
  %v232 = vsub.s32 0, %v231
  %v233 = vrot.slane %v20, %v232
  %v234 = vadd.f32 %v229, %v233
  %235 = vst [vmem:[%s4] sm:$0xff] %v234
  // Predicated region
  $region18: #{projection_head.1} parent=0 // pred_check
    _
  $region19: #{projection_head.1} parent=0 // pred_check_branch
    %237 = sbr.rel (0) target = $region21
  $region20: #{projection_head.1} parent=0 // pred_region
    _
  $region21: #{projection_head.1} parent=0 // pred_fallthru
    _
  // Predicated region
  $region22: #{projection_head.1} parent=0 // pred_check
    _
  $region23: #{projection_head.1} parent=0 // pred_check_branch
    %239 = sbr.rel (0) target = $region25
  $region24: #{projection_head.1} parent=0 // pred_region
    _
  $region25: #{projection_head.1} parent=0 // pred_fallthru
    _

</llo_original>
